<compile_context>
chip_gen: v5e
topology: v5e:2x2
jax: 0.10.0
libtpu: 0.0.40
codegen_flags: <defaults>
</compile_context>

<pallas_src>
import math

import jax
import jax.numpy as jnp
from jax.experimental import pallas as pl
from jax.experimental.pallas import tpu as pltpu

_HALF_LOG_2PI = 0.5 * math.log(2.0 * math.pi)

_LANE = 128
_SUBLANE = 8
# Rows (of 128 lanes) per block: 8192 rows == 4 MiB f32 per x block.  Keeps the
# fixed ~0.35 µs per-grid-step overhead well below 10% of the HBM time on every
# generation while the double-buffered footprint stays inside _VMEM_LIMIT_BYTES.
_MAX_BLOCK_ROWS = 8192
# Safe scoped-VMEM request on all generations (v5e/v6e: 128 MiB physical,
# v7x: 64 MiB per TensorCore).
_VMEM_LIMIT_BYTES = 48 << 20


def _choose_row_tiling(R):
    """Return (tile_r, Rp): rows per block and the (possibly padded) row count."""
    if R <= _MAX_BLOCK_ROWS:
        return R, R            # full-extent block: no 8-sublane divisibility rule
    cap = (_MAX_BLOCK_ROWS // _SUBLANE) * _SUBLANE
    c = cap
    floor = max(_SUBLANE, cap // 2)   # never shrink blocks below ~half the budget
    while c >= floor:
        if R % c == 0:
            return c, R
        c -= _SUBLANE
    # No friendly divisor: pad rows up instead of degenerating to tiny blocks.
    Rp = -(-R // cap) * cap
    return cap, Rp


def _choose_batch_tiling(B, tile_r):
    """Largest tile_b dividing B, keeping >=2 batch blocks (megacore) and the
    per-block row count under the budget."""
    tile_b = 1
    while (B % (tile_b * 2) == 0
           and B // (tile_b * 2) >= 2
           and tile_b * 2 * tile_r <= _MAX_BLOCK_ROWS):
        tile_b *= 2
    return tile_b


def _make_flow_kernel(tile_r, nr, emit_z, params_resident, sub_acc):
    grouped = (sub_acc == _SUBLANE)

    def kernel(x_ref, inv_ref, sh_ref, *out_refs):
        if emit_z:
            z_ref, psum_ref = out_refs
        else:
            (psum_ref,) = out_refs

        ri = pl.program_id(1)

        @pl.when(ri == 0)
        def _():
            psum_ref[...] = jnp.zeros_like(psum_ref)

        x = x_ref[...].astype(jnp.float32)            # (tile_b, tile_r, 128)

        if params_resident and nr > 1:
            off = pl.multiple_of(ri * tile_r, tile_r)
            inv = inv_ref[0, pl.ds(off, tile_r), :]   # (tile_r, 128)
            sh = sh_ref[0, pl.ds(off, tile_r), :]
        else:
            inv = inv_ref[0]                          # (tile_r, 128)
            sh = sh_ref[0]

        # forward: z = (x - shift) * exp(-logscale)
        z = (x - sh) * inv
        if emit_z:
            z_ref[...] = z.astype(z_ref.dtype)

        q = z * z
        tb = q.shape[0]
        if grouped:
            # Vreg-aligned partial reduce (pure VALU adds); the 8-sublane
            # collapse is deferred to the wrapper.
            psum_ref[...] += jnp.sum(
                q.reshape(tb, tile_r // _SUBLANE, _SUBLANE, _LANE), axis=1)
        else:
            psum_ref[...] += jnp.sum(q, axis=1, keepdims=True)

    return kernel


def flow_log_probability(x_nchw, logscale, shift, *, return_z=True):
    """return_z=True  -> (z with x's shape/dtype, logProbability per sample [B])
       return_z=False -> logProbability per sample [B]  (no z HBM writeback)."""
    B = x_nchw.shape[0]
    D = int(math.prod(x_nchw.shape[1:]))

    x2 = x_nchw.reshape(B, D)
    ls = logscale.reshape(D).astype(jnp.float32)
    sh = shift.reshape(D).astype(jnp.float32)
    inv_scale = jnp.exp(-ls)
    # Data-independent term: prior constant + flow log-det (hoisted out of kernel).
    const = -(D * _HALF_LOG_2PI) - jnp.sum(ls)

    # Pad only to a multiple of 128 lanes (full-extent row blocks need no
    # 8-sublane divisibility); extra row padding only for huge awkward D.
    D128 = -(-D // _LANE) * _LANE
    R = D128 // _LANE
    tile_r, Rp = _choose_row_tiling(R)
    Dp = Rp * _LANE

    if Dp != D:
        pad = Dp - D
        x2 = jnp.pad(x2, ((0, 0), (0, pad)))
        inv_scale = jnp.pad(inv_scale, (0, pad))   # padded lanes: z = (0-0)*0 = 0
        sh = jnp.pad(sh, (0, pad))

    x3 = x2.reshape(B, Rp, _LANE)
    inv3 = inv_scale.reshape(1, Rp, _LANE)
    sh3 = sh.reshape(1, Rp, _LANE)

    tile_b = _choose_batch_tiling(B, tile_r)
    nr = Rp // tile_r
    grid = (B // tile_b, nr)

    sub_acc = _SUBLANE if tile_r % _SUBLANE == 0 else 1

    # Keep the affine params fully VMEM-resident (single DMA for the whole
    # grid) when the double-buffered footprint allows it.
    itemsize = jnp.dtype(x_nchw.dtype).itemsize
    block_x = tile_b * tile_r * _LANE * itemsize
    block_z = block_x if return_z else 0
    psum_b = tile_b * sub_acc * _LANE * 4
    base_fp = 2 * (block_x + block_z + psum_b)
    resident_fp = 2 * (2 * Rp * _LANE * 4)
    params_resident = (base_fp + resident_fp) <= (_VMEM_LIMIT_BYTES - (8 << 20))

    if params_resident:
        param_spec = pl.BlockSpec((1, Rp, _LANE), lambda bi, ri: (0, 0, 0))
    else:
        param_spec = pl.BlockSpec((1, tile_r, _LANE), lambda bi, ri: (0, ri, 0))

    in_specs = [
        pl.BlockSpec((tile_b, tile_r, _LANE), lambda bi, ri: (bi, ri, 0)),  # x
        param_spec,                                                         # inv_scale
        param_spec,                                                         # shift
    ]

    psum_spec = pl.BlockSpec((tile_b, sub_acc, _LANE), lambda bi, ri: (bi, 0, 0))
    psum_shape = jax.ShapeDtypeStruct((B, sub_acc, _LANE), jnp.float32)

    if return_z:
        out_specs = [
            pl.BlockSpec((tile_b, tile_r, _LANE), lambda bi, ri: (bi, ri, 0)),  # z
            psum_spec,                                                          # partial sums
        ]
        out_shape = (jax.ShapeDtypeStruct((B, Rp, _LANE), x_nchw.dtype), psum_shape)
    else:
        out_specs = psum_spec
        out_shape = psum_shape

    kernel = _make_flow_kernel(tile_r, nr, return_z, params_resident, sub_acc)

    result = pl.pallas_call(
        kernel,
        out_shape=out_shape,
        grid_spec=pltpu.PrefetchScalarGridSpec(
            num_scalar_prefetch=0,
            grid=grid,
            in_specs=in_specs,
            out_specs=out_specs,
        ),
        compiler_params=pltpu.CompilerParams(
            dimension_semantics=("parallel", "arbitrary"),
            vmem_limit_bytes=_VMEM_LIMIT_BYTES,
        ),
    )(x3, inv3, sh3)

    if return_z:
        z3, psum = result
    else:
        psum = result

    logp = -0.5 * jnp.sum(psum, axis=(1, 2)) + const

    if not return_z:
        return logp

    z = z3.reshape(B, Dp)
    if Dp != D:
        z = z[:, :D]
    return z.reshape(x_nchw.shape), logp


def flow_energy(x_nchw, logscale, shift):
    # logp-only kernel: no z writeback → half the HBM traffic of the full path.
    return -flow_log_probability(x_nchw, logscale, shift, return_z=False)


def _reference(x, logscale, shift):
    B = x.shape[0]
    D = int(math.prod(x.shape[1:]))
    xf = x.reshape(B, D).astype(jnp.float32)
    z = (xf - shift.reshape(D)[None, :]) * jnp.exp(-logscale.reshape(D)[None, :])
    prior_lp = jnp.sum(-0.5 * z * z - _HALF_LOG_2PI, axis=-1)
    return z, prior_lp - jnp.sum(logscale)


if __name__ == "__main__":
    key = jax.random.PRNGKey(0)

    # ---- main case: image-like flow input, D multiple of 128 (no padding) ----
    B, C, H, W = 2, 4, 16, 16
    D = C * H * W
    kx, kls, ksh, k2 = jax.random.split(key, 4)
    x = jax.random.normal(kx, (B, C, H, W), dtype=jnp.float32)
    logscale = 0.05 * jax.random.normal(kls, (D,), dtype=jnp.float32)
    shift = 0.10 * jax.random.normal(ksh, (D,), dtype=jnp.float32)

    z, logp = flow_log_probability(x, logscale, shift)
    energy = flow_energy(x, logscale, shift)          # logp-only kernel path
    jax.block_until_ready((z, logp, energy))

    z_ref, logp_ref = _reference(x, logscale, shift)
    assert z.shape == x.shape and z.dtype == x.dtype
    assert jnp.allclose(z.reshape(B, D), z_ref, atol=1e-5, rtol=1e-5)
    assert jnp.allclose(logp, logp_ref, atol=1e-3, rtol=1e-5)
    assert jnp.allclose(energy, -logp_ref, atol=1e-3, rtol=1e-5)

    # ---- ragged case: D not a multiple of 128 (exercises the padded path) ----
    C2, H2, W2 = 3, 10, 10
    D2 = C2 * H2 * W2
    ka, kb, kc = jax.random.split(k2, 3)
    x2 = jax.random.normal(ka, (B, C2, H2, W2), dtype=jnp.float32)
    logscale2 = 0.05 * jax.random.normal(kb, (D2,), dtype=jnp.float32)
    shift2 = 0.10 * jax.random.normal(kc, (D2,), dtype=jnp.float32)

    z2, logp2 = flow_log_probability(x2, logscale2, shift2)
    e2 = flow_energy(x2, logscale2, shift2)
    jax.block_until_ready((z2, logp2, e2))

    z2_ref, logp2_ref = _reference(x2, logscale2, shift2)
    assert jnp.allclose(z2.reshape(B, D2), z2_ref, atol=1e-5, rtol=1e-5)
    assert jnp.allclose(logp2, logp2_ref, atol=1e-3, rtol=1e-5)
    assert jnp.allclose(e2, -logp2_ref, atol=1e-3, rtol=1e-5)

    print("KERNEL_OK")
</pallas_src>

<mosaic_0001>
module attributes {stable_mosaic.version = 11 : i64} {
  func.func @kernel(%arg0: i32, %arg1: i32, %arg2: memref<1x8x128xf32, #tpu.memory_space<vmem>>, %arg3: memref<1x8x128xf32, #tpu.memory_space<vmem>>, %arg4: memref<1x8x128xf32, #tpu.memory_space<vmem>>, %arg5: memref<1x8x128xf32, #tpu.memory_space<vmem>>, %arg6: memref<1x8x128xf32, #tpu.memory_space<vmem>>) attributes {dimension_semantics = [#tpu.dimension_semantics<parallel>, #tpu.dimension_semantics<arbitrary>], iteration_bounds = array<i64: 2, 1>, scalar_prefetch = 0 : i64, scratch_operands = 0 : i64, tpu.core_type = #tpu.core_type<tc>, window_params = [{transform_indices = @transform_0, window_bounds = array<i64: 1, 8, 128>}, {pipeline_mode = #tpu.pipeline_mode<synchronous>, transform_indices = @transform_1, window_bounds = array<i64: 1, 8, 128>}, {pipeline_mode = #tpu.pipeline_mode<synchronous>, transform_indices = @transform_2, window_bounds = array<i64: 1, 8, 128>}, {transform_indices = @transform_3, window_bounds = array<i64: 1, 8, 128>}, {transform_indices = @transform_4, window_bounds = array<i64: 1, 8, 128>}]} {
    %c0_i32 = arith.constant 0 : i32
    %0 = arith.cmpi eq, %arg1, %c0_i32 : i32
    %1 = arith.extui %0 : i1 to i32
    %c0_i32_0 = arith.constant 0 : i32
    %2 = arith.cmpi ne, %1, %c0_i32_0 : i32
    scf.if %2 {
      %cst_18 = arith.constant 0.000000e+00 : f32
      %19 = vector.broadcast %cst_18 : f32 to vector<1x8x128xf32>
      %c0_19 = arith.constant 0 : index
      %c0_20 = arith.constant 0 : index
      %c0_21 = arith.constant 0 : index
      %20 = vector.load %arg6[%c0_19, %c0_20, %c0_21] : memref<1x8x128xf32, #tpu.memory_space<vmem>>, vector<1x8x128xf32>
      tpu.vector_store %arg6[%c0_19, %c0_20, %c0_21], %19 {strides = array<i32>} : memref<1x8x128xf32, #tpu.memory_space<vmem>>, vector<1x8x128xf32>,
    } else {
    }
    %c0 = arith.constant 0 : index
    %c0_1 = arith.constant 0 : index
    %c0_2 = arith.constant 0 : index
    %3 = vector.load %arg2[%c0, %c0_1, %c0_2] : memref<1x8x128xf32, #tpu.memory_space<vmem>>, vector<1x8x128xf32>
    %c0_3 = arith.constant 0 : index
    %c0_4 = arith.constant 0 : index
    %c0_5 = arith.constant 0 : index
    %4 = vector.load %arg3[%c0_3, %c0_4, %c0_5] : memref<1x8x128xf32, #tpu.memory_space<vmem>>, vector<1x8x128xf32>
    %5 = vector.shape_cast %4 : vector<1x8x128xf32> to vector<8x128xf32>
    %c0_6 = arith.constant 0 : index
    %c0_7 = arith.constant 0 : index
    %c0_8 = arith.constant 0 : index
    %6 = vector.load %arg4[%c0_6, %c0_7, %c0_8] : memref<1x8x128xf32, #tpu.memory_space<vmem>>, vector<1x8x128xf32>
    %7 = vector.shape_cast %6 : vector<1x8x128xf32> to vector<8x128xf32>
    %8 = vector.shape_cast %7 : vector<8x128xf32> to vector<1x8x128xf32>
    %9 = arith.subf %3, %8 : vector<1x8x128xf32>
    %10 = vector.shape_cast %5 : vector<8x128xf32> to vector<1x8x128xf32>
    %11 = arith.mulf %9, %10 : vector<1x8x128xf32>
    %c0_9 = arith.constant 0 : index
    %c0_10 = arith.constant 0 : index
    %c0_11 = arith.constant 0 : index
    %12 = vector.load %arg5[%c0_9, %c0_10, %c0_11] : memref<1x8x128xf32, #tpu.memory_space<vmem>>, vector<1x8x128xf32>
    tpu.vector_store %arg5[%c0_9, %c0_10, %c0_11], %11 {strides = array<i32>} : memref<1x8x128xf32, #tpu.memory_space<vmem>>, vector<1x8x128xf32>,
    %13 = arith.mulf %11, %11 : vector<1x8x128xf32>
    %c0_12 = arith.constant 0 : index
    %c0_13 = arith.constant 0 : index
    %c0_14 = arith.constant 0 : index
    %14 = vector.load %arg6[%c0_12, %c0_13, %c0_14] : memref<1x8x128xf32, #tpu.memory_space<vmem>>, vector<1x8x128xf32>
    %15 = vector.shape_cast %13 : vector<1x8x128xf32> to vector<1x1x8x128xf32>
    %cst = arith.constant dense<0.000000e+00> : vector<1x8x128xf32>
    %16 = vector.multi_reduction <add>, %15, %cst [1] : vector<1x1x8x128xf32> to vector<1x8x128xf32>
    %17 = arith.addf %14, %16 : vector<1x8x128xf32>
    %c0_15 = arith.constant 0 : index
    %c0_16 = arith.constant 0 : index
    %c0_17 = arith.constant 0 : index
    %18 = vector.load %arg6[%c0_15, %c0_16, %c0_17] : memref<1x8x128xf32, #tpu.memory_space<vmem>>, vector<1x8x128xf32>
    tpu.vector_store %arg6[%c0_15, %c0_16, %c0_17], %17 {strides = array<i32>} : memref<1x8x128xf32, #tpu.memory_space<vmem>>, vector<1x8x128xf32>,
    return
  }
  func.func @transform_0(%arg0: i32, %arg1: i32) -> (i32, i32, i32) {
    %c0_i32 = arith.constant 0 : i32
    %c0_i32_0 = arith.constant 0 : i32
    return %arg0, %arg1, %c0_i32 : i32, i32, i32
  }
  func.func @transform_1(%arg0: i32, %arg1: i32) -> (i32, i32, i32) {
    %c0_i32 = arith.constant 0 : i32
    %c0_i32_0 = arith.constant 0 : i32
    %c0_i32_1 = arith.constant 0 : i32
    %c0_i32_2 = arith.constant 0 : i32
    return %c0_i32, %c0_i32_0, %c0_i32_1 : i32, i32, i32
  }
  func.func @transform_2(%arg0: i32, %arg1: i32) -> (i32, i32, i32) {
    %c0_i32 = arith.constant 0 : i32
    %c0_i32_0 = arith.constant 0 : i32
    %c0_i32_1 = arith.constant 0 : i32
    %c0_i32_2 = arith.constant 0 : i32
    return %c0_i32, %c0_i32_0, %c0_i32_1 : i32, i32, i32
  }
  func.func @transform_3(%arg0: i32, %arg1: i32) -> (i32, i32, i32) {
    %c0_i32 = arith.constant 0 : i32
    %c0_i32_0 = arith.constant 0 : i32
    return %arg0, %arg1, %c0_i32 : i32, i32, i32
  }
  func.func @transform_4(%arg0: i32, %arg1: i32) -> (i32, i32, i32) {
    %c0_i32 = arith.constant 0 : i32
    %c0_i32_0 = arith.constant 0 : i32
    %c0_i32_1 = arith.constant 0 : i32
    return %arg0, %c0_i32, %c0_i32_0 : i32, i32, i32
  }
}

</mosaic_0001>

<llo_original>
// kernel: tpu_custom_call.1
$region0: #{tpu_custom_call.1}
  #allocation0 [shape = 'u32[]', space=smem, size = 0x4, offset = 0x4, fixed_abs, tag = 'smem constant byte address 0x4 - core index']
  #allocation1 [shape = 'u32[72,128]{1,0:T(1,128)}', space=vmem, size = 0x9000, scoped, tag = 'internal scratch']
  %s0 = inlined_call_operand.hbm [shape: f32[2,8,128], index: 0, kind: input, shape index: {}]
  %s1 = inlined_call_operand.hbm [shape: f32[1,8,128], index: 1, kind: input, shape index: {}]
  %s2 = inlined_call_operand.hbm [shape: f32[1,8,128], index: 2, kind: input, shape index: {}]
  %s3 = inlined_call_operand.hbm [shape: f32[2,8,128], index: 3, kind: output, shape index: {0}]
  %s4 = inlined_call_operand.hbm [shape: f32[2,8,128], index: 4, kind: output, shape index: {1}]
  %5 = xla_tuple %s3, %s4
  %s6 = sld [smem:[#allocation0]]
  $region69: #{tpu_custom_call.1} parent=0
    _
  %s8 = ssub.s32 1, %s6
  %s9 = scalar_select 0, %s8, %s6
  $region1: #{tpu_custom_call.1} parent=0
    #allocation2 [shape = 'u8[8192]{0}', space=vmem, size = 0x2000, scoped, tag = 'input window, operand 0']
    #allocation3 [shape = 's32[2]{0}', space=sflag, size = 0x8, scoped, tag = 'scoped memory for tpu_custom_call.1']
    #allocation4 [shape = 's32[2]{0}', space=sflag, size = 0x8, scoped, tag = 'scoped memory for tpu_custom_call.1']
    #allocation5 [shape = 'u8[4096]{0}', space=vmem, size = 0x1000, scoped, tag = 'input window, operand 1, single buffered']
    #allocation6 [shape = 's32[1]{0}', space=sflag, size = 0x4, scoped, tag = 'scoped memory for tpu_custom_call.1']
    #allocation7 [shape = 'u8[4096]{0}', space=vmem, size = 0x1000, scoped, tag = 'input window, operand 2, single buffered']
    #allocation8 [shape = 'u8[8192]{0}', space=vmem, size = 0x2000, scoped, tag = 'output window, operand 0']
    #allocation9 [shape = 'u8[8192]{0}', space=vmem, size = 0x2000, scoped, tag = 'output window, operand 1']
    #allocation10 [shape = 's32[2]{0}', space=sflag, size = 0x8, scoped, tag = 'scoped memory for tpu_custom_call.1']
    %10 = vsyncpa [#allocation3], 0
    %s11 = scalar_lea.sflag [#allocation3], 1
    %12 = vsyncpa %s11, 0
    %13 = vsyncpa [#allocation6], 0
    %14 = vsyncpa [#allocation4], 0
    %s15 = scalar_lea.sflag [#allocation4], 1
    %16 = vsyncpa %s15, 0
    %17 = vsyncpa [#allocation10], 0
    %s18 = scalar_lea.sflag [#allocation10], 1
    %19 = vsyncpa %s18, 0
    loop: start=0, step=1, limit=4
    $region2: #{tpu_custom_call.1} parent=1 // loop_pre_header
      _
    $region3: #{tpu_custom_call.1} parent=1 // loop_header
      %s21 = sphi 0, %s25
      %p22 = scmp.ge.s32.totalorder %s21, 4
      %s28 = sphi 0, %s40
      %s29 = sphi 0, %s36
      %s30 = sphi 0, %s28
      %s31 = sphi 0, %s29
      %s32 = sphi 0, %s30
      %s33 = sphi 0, %s31
      %s45 = sphi 0, %s47
      %s48 = sphi 0, %s45
      %s49 = sphi 0, %s48
      %s65 = sphi 0, %s49
      %s69 = sphi 0, %s69
      %s71 = sphi 0, %s69
      %s72 = sphi 0, %s71
      %s86 = sphi 0, %s72
      %s90 = sphi 0, %s90
      %s92 = sphi 0, %s90
      %s93 = sphi 0, %s92
      %s107 = sphi 0, %s93
      %s115 = sphi 0, %s117
      %s118 = sphi 0, %s115
      %s119 = sphi 0, %s118
      %s135 = sphi 0, %s119
      %s141 = sphi 0, %s143
      %s144 = sphi 0, %s141
      %s145 = sphi 0, %s144
      %s161 = sphi 0, %s145
    $region4: #{tpu_custom_call.1} parent=1 // loop_header_branch
      %24 = sbr.rel (%p22) target = $region8
    $region5: #{tpu_custom_call.1} parent=1 // loop_body
      %s26 = ssub.s32 %s21, 1
      %s27 = ssub.s32 %s21, 2
      %s34 = sadd.s32 1, %s29
      %p35 = scmp.ge.s32.totalorder %s34, 1
      %s36 = scalar_select %p35, 0, %s34
      %s37 = sadd.s32 1, %s28
      %s38 = scalar_select %p35, %s37, %s28
      %p39 = scmp.ge.s32.totalorder %s38, 2
      %s40 = scalar_select %p39, 0, %s38
      %s41 = ssub.s32 %s28, %s40
      %s42 = ssub.s32 %s29, %s36
      %s43 = sor.u32 %s41, %s42
      %p44 = scmp.eq.s32.totalorder %s43, 0
      %s46 = sadd.s32 %s45, 1
      %s47 = scalar_select %p44, %s45, %s46
      %p50 = pneg %p44
      %p51 = scmp.eq.s32.totalorder %s21, 1
      %p52 = por %p50, %p51
      %p53 = scmp.ne.s32.totalorder %s45, %s48
      %p54 = scmp.eq.s32.totalorder %s21, 0
      %p55 = por %p53, %p54
      %p56 = scmp.ne.s32.totalorder %s45, %s48
      %p57 = scmp.eq.s32.totalorder %s26, 1
      %p58 = por %p56, %p57
      %p59 = scmp.ne.s32.totalorder %s48, %s49
      %p60 = scmp.eq.s32.totalorder %s26, 0
      %p61 = por %p59, %p60
      %p62 = scmp.ne.s32.totalorder %s48, %s49
      %p63 = scmp.eq.s32.totalorder %s27, 1
      %p64 = por %p62, %p63
      %p66 = scmp.ne.s32.totalorder %s49, %s65
      %p67 = scmp.eq.s32.totalorder %s27, 0
      %p68 = por %p66, %p67
      %s70 = sadd.s32 %s69, 1
      %p73 = scmp.eq.s32.totalorder %s21, 1
      %p74 = scmp.ne.s32.totalorder %s69, %s71
      %p75 = scmp.eq.s32.totalorder %s21, 0
      %p76 = por %p74, %p75
      %p77 = scmp.ne.s32.totalorder %s69, %s71
      %p78 = scmp.eq.s32.totalorder %s26, 1
      %p79 = por %p77, %p78
      %p80 = scmp.ne.s32.totalorder %s71, %s72
      %p81 = scmp.eq.s32.totalorder %s26, 0
      %p82 = por %p80, %p81
      %p83 = scmp.ne.s32.totalorder %s71, %s72
      %p84 = scmp.eq.s32.totalorder %s27, 1
      %p85 = por %p83, %p84
      %p87 = scmp.ne.s32.totalorder %s72, %s86
      %p88 = scmp.eq.s32.totalorder %s27, 0
      %p89 = por %p87, %p88
      %s91 = sadd.s32 %s90, 1
      %p94 = scmp.eq.s32.totalorder %s21, 1
      %p95 = scmp.ne.s32.totalorder %s90, %s92
      %p96 = scmp.eq.s32.totalorder %s21, 0
      %p97 = por %p95, %p96
      %p98 = scmp.ne.s32.totalorder %s90, %s92
      %p99 = scmp.eq.s32.totalorder %s26, 1
      %p100 = por %p98, %p99
      %p101 = scmp.ne.s32.totalorder %s92, %s93
      %p102 = scmp.eq.s32.totalorder %s26, 0
      %p103 = por %p101, %p102
      %p104 = scmp.ne.s32.totalorder %s92, %s93
      %p105 = scmp.eq.s32.totalorder %s27, 1
      %p106 = por %p104, %p105
      %p108 = scmp.ne.s32.totalorder %s93, %s107
      %p109 = scmp.eq.s32.totalorder %s27, 0
      %p110 = por %p108, %p109
      %s111 = ssub.s32 %s28, %s40
      %s112 = ssub.s32 %s29, %s36
      %s113 = sor.u32 %s111, %s112
      %p114 = scmp.eq.s32.totalorder %s113, 0
      %s116 = sadd.s32 %s115, 1
      %s117 = scalar_select %p114, %s115, %s116
      %p120 = pneg %p114
      %p121 = scmp.eq.s32.totalorder %s21, 1
      %p122 = por %p120, %p121
      %p123 = scmp.ne.s32.totalorder %s115, %s118
      %p124 = scmp.eq.s32.totalorder %s21, 0
      %p125 = por %p123, %p124
      %p126 = scmp.ne.s32.totalorder %s115, %s118
      %p127 = scmp.eq.s32.totalorder %s26, 1
      %p128 = por %p126, %p127
      %p129 = scmp.ne.s32.totalorder %s118, %s119
      %p130 = scmp.eq.s32.totalorder %s26, 0
      %p131 = por %p129, %p130
      %p132 = scmp.ne.s32.totalorder %s118, %s119
      %p133 = scmp.eq.s32.totalorder %s27, 1
      %p134 = por %p132, %p133
      %p136 = scmp.ne.s32.totalorder %s119, %s135
      %p137 = scmp.eq.s32.totalorder %s27, 0
      %p138 = por %p136, %p137
      %s139 = ssub.s32 %s28, %s40
      %p140 = scmp.eq.s32.totalorder %s139, 0
      %s142 = sadd.s32 %s141, 1
      %s143 = scalar_select %p140, %s141, %s142
      %p146 = pneg %p140
      %p147 = scmp.eq.s32.totalorder %s21, 1
      %p148 = por %p146, %p147
      %p149 = scmp.ne.s32.totalorder %s141, %s144
      %p150 = scmp.eq.s32.totalorder %s21, 0
      %p151 = por %p149, %p150
      %p152 = scmp.ne.s32.totalorder %s141, %s144
      %p153 = scmp.eq.s32.totalorder %s26, 1
      %p154 = por %p152, %p153
      %p155 = scmp.ne.s32.totalorder %s144, %s145
      %p156 = scmp.eq.s32.totalorder %s26, 0
      %p157 = por %p155, %p156
      %p158 = scmp.ne.s32.totalorder %s144, %s145
      %p159 = scmp.eq.s32.totalorder %s27, 1
      %p160 = por %p158, %p159
      %p162 = scmp.ne.s32.totalorder %s145, %s161
      %p163 = scmp.eq.s32.totalorder %s27, 0
      %p164 = por %p162, %p163
      %p165 = scmp.le.s32.totalorder 1, %s21
      %p166 = scmp.lt.s32.totalorder %s21, 3
      %p167 = pnand %p165, %p166
      %p168 = pneg %p167
      // Predicated region
      $region9: #{tpu_custom_call.1} parent=5 // pred_check
        _
      $region10: #{tpu_custom_call.1} parent=5 // pred_check_branch
        %170 = sbr.rel (%p167) target = $region12
      $region11: #{tpu_custom_call.1} parent=5 // pred_region
        %s171 = ssub.s32 %s21, 1
        // Predicated region
        $region13: #{tpu_custom_call.1} parent=11 // pred_check
          %p172 = pneg %p82
        $region14: #{tpu_custom_call.1} parent=11 // pred_check_branch
          %174 = sbr.rel (%p172) target = $region16
        $region15: #{tpu_custom_call.1} parent=11 // pred_region
          %176 = vsyncadd [#allocation6], 0
          %s178 = sshll.u32 %s1, 4
          %s179 = int_to_ptr.hbm [resolvable:$true] %s178
          %s180 = sshll.u32 [#allocation5], 4
          %s181 = int_to_ptr.vmem [resolvable:$true] %s180
          %183 = dma.hbm_to_vmem [thread:$0]  %s179, 128, %s181, [#allocation6]
        $region16: #{tpu_custom_call.1} parent=11 // pred_fallthru
          _
        // Predicated region
        $region17: #{tpu_custom_call.1} parent=11 // pred_check
          %p184 = pneg %p103
        $region18: #{tpu_custom_call.1} parent=11 // pred_check_branch
          %186 = sbr.rel (%p184) target = $region20
        $region19: #{tpu_custom_call.1} parent=11 // pred_region
          %188 = vsyncadd [#allocation6], 0
          %s190 = sshll.u32 %s2, 4
          %s191 = int_to_ptr.hbm [resolvable:$true] %s190
          %s192 = sshll.u32 [#allocation7], 4
          %s193 = int_to_ptr.vmem [resolvable:$true] %s192
          %195 = dma.hbm_to_vmem [thread:$0]  %s191, 128, %s193, [#allocation6]
        $region20: #{tpu_custom_call.1} parent=11 // pred_fallthru
          _
      $region12: #{tpu_custom_call.1} parent=5 // pred_fallthru
        _
      %p196 = scmp.lt.s32.totalorder %s21, 2
      // Predicated region
      $region21: #{tpu_custom_call.1} parent=5 // pred_check
        %p197 = pneg %p196
      $region22: #{tpu_custom_call.1} parent=5 // pred_check_branch
        %199 = sbr.rel (%p197) target = $region24
      $region23: #{tpu_custom_call.1} parent=5 // pred_region
        // Predicated region
        $region25: #{tpu_custom_call.1} parent=23 // pred_check
          %p200 = pneg %p55
        $region26: #{tpu_custom_call.1} parent=23 // pred_check_branch
          %202 = sbr.rel (%p200) target = $region28
        $region27: #{tpu_custom_call.1} parent=23 // pred_region
          %s203 = sand.u32 %s45, 1
          %s204 = scalar_lea.sflag [#allocation3], %s203
          %s205 = sand.u32 %s45, 1
          %s206 = smul.addr %s205, 8
          %s207 = scalar_lea.vmem [#allocation2], %s206
          %209 = vsyncadd %s204, 0
          %s210 = sadd.s32 %s29, %s28
          %s211 = smul.addr %s210, 8
          %s212 = scalar_lea.hbm %s0, %s211
          %s214 = sshll.u32 %s212, 4
          %s215 = int_to_ptr.hbm [resolvable:$true] %s214
          %s216 = sshll.u32 %s207, 4
          %s217 = int_to_ptr.vmem [resolvable:$true] %s216
          %219 = dma.hbm_to_vmem [thread:$0]  %s215, 128, %s217, %s204
        $region28: #{tpu_custom_call.1} parent=23 // pred_fallthru
          _
      $region24: #{tpu_custom_call.1} parent=5 // pred_fallthru
        _
      %p220 = scmp.le.s32.totalorder 1, %s21
      %p221 = scmp.lt.s32.totalorder %s21, 3
      %p222 = pnand %p220, %p221
      %p223 = pneg %p222
      // Predicated region
      $region29: #{tpu_custom_call.1} parent=5 // pred_check
        _
      $region30: #{tpu_custom_call.1} parent=5 // pred_check_branch
        %225 = sbr.rel (%p222) target = $region32
      $region31: #{tpu_custom_call.1} parent=5 // pred_region
        %s226 = ssub.s32 %s21, 1
        %s227 = sand.u32 %s48, 1
        %s228 = scalar_lea.sflag [#allocation3], %s227
        %s229 = sand.u32 %s48, 1
        %s230 = smul.addr %s229, 8
        %s231 = scalar_lea.vmem [#allocation2], %s230
        // Predicated region
        $region33: #{tpu_custom_call.1} parent=31 // pred_check
          %p232 = pneg %p61
        $region34: #{tpu_custom_call.1} parent=31 // pred_check_branch
          %234 = sbr.rel (%p232) target = $region36
        $region35: #{tpu_custom_call.1} parent=31 // pred_region
          %236 = dma.done %s228, 128
        $region36: #{tpu_custom_call.1} parent=31 // pred_fallthru
          _
        // Predicated region
        $region37: #{tpu_custom_call.1} parent=31 // pred_check
          %p237 = pneg %p82
        $region38: #{tpu_custom_call.1} parent=31 // pred_check_branch
          %239 = sbr.rel (%p237) target = $region40
        $region39: #{tpu_custom_call.1} parent=31 // pred_region
          %241 = dma.done [#allocation6], 128
        $region40: #{tpu_custom_call.1} parent=31 // pred_fallthru
          _
        // Predicated region
        $region41: #{tpu_custom_call.1} parent=31 // pred_check
          %p242 = pneg %p103
        $region42: #{tpu_custom_call.1} parent=31 // pred_check_branch
          %244 = sbr.rel (%p242) target = $region44
        $region43: #{tpu_custom_call.1} parent=31 // pred_region
          %246 = dma.done [#allocation6], 128
        $region44: #{tpu_custom_call.1} parent=31 // pred_fallthru
          _
        %s247 = sand.u32 %s48, 1
        %s248 = scalar_lea.sflag [#allocation3], %s247
        %s249 = sand.u32 %s48, 1
        %s250 = smul.addr %s249, 8
        %s251 = scalar_lea.vmem [#allocation2], %s250
        %p252 = pneg %p61
        %p253 = pneg %p58
        %p254 = pneg %p82
        %p255 = pneg %p79
        %p256 = pneg %p103
        %p257 = pneg %p100
        %p258 = pneg %p131
        %p259 = pneg %p128
        %s260 = sand.u32 %s118, 1
        %s261 = scalar_lea.sflag [#allocation4], %s260
        %s262 = sand.u32 %s118, 1
        %s263 = smul.addr %s262, 8
        %s264 = scalar_lea.vmem [#allocation8], %s263
        %p265 = pneg %p157
        %p266 = pneg %p154
        %s267 = sand.u32 %s144, 1
        %s268 = scalar_lea.sflag [#allocation10], %s267
        %s269 = sand.u32 %s144, 1
        %s270 = smul.addr %s269, 8
        %s271 = scalar_lea.vmem [#allocation9], %s270
        %p272 = scmp.eq.s32.totalorder %s31, 0
        // Predicated region
        $region45: #{tpu_custom_call.1} parent=31 // pred_check
          %p273 = pneg %p272
        $region46: #{tpu_custom_call.1} parent=31 // pred_check_branch
          %275 = sbr.rel (%p273) target = $region48
        $region47: #{tpu_custom_call.1} parent=31 // pred_region
          %276 = vst [vmem:[%s271] sm:$0xff] 0.0
        $region48: #{tpu_custom_call.1} parent=31 // pred_fallthru
          _
        %v277 = vld [vmem:[%s231] sm:$0xff]
        %v278 = vld [vmem:[#allocation5] sm:$0xff]
        %v279 = vld [vmem:[#allocation7] sm:$0xff]
        %v280 = vsub.f32 %v277, %v279
        %v281 = vmul.f32 %v280, %v278
        %282 = vst [vmem:[%s264] sm:$0xff] %v281
        %v283 = vmul.f32 %v281, %v281
        %v284 = vld [vmem:[%s271] sm:$0xff]
        %v285 = vadd.f32 %v283, 0.0
        %v286 = vadd.f32 %v284, %v285
        %287 = vst [vmem:[%s271] sm:$0xff] %v286
        %s288 = sand.u32 %s118, 1
        %s289 = scalar_lea.sflag [#allocation4], %s288
        %s290 = sand.u32 %s118, 1
        %s291 = smul.addr %s290, 8
        %s292 = scalar_lea.vmem [#allocation8], %s291
        %s293 = sand.u32 %s144, 1
        %s294 = scalar_lea.sflag [#allocation10], %s293
        %s295 = sand.u32 %s144, 1
        %s296 = smul.addr %s295, 8
        %s297 = scalar_lea.vmem [#allocation9], %s296
        // Predicated region
        $region49: #{tpu_custom_call.1} parent=31 // pred_check
          %p298 = pneg %p128
        $region50: #{tpu_custom_call.1} parent=31 // pred_check_branch
          %300 = sbr.rel (%p298) target = $region52
        $region51: #{tpu_custom_call.1} parent=31 // pred_region
          %302 = vsyncadd %s289, 0
          %s303 = sadd.s32 %s31, %s30
          %s304 = smul.addr %s303, 8
          %s305 = scalar_lea.hbm %s3, %s304
          %s307 = sshll.u32 %s292, 4
          %s308 = int_to_ptr.vmem [resolvable:$true] %s307
          %s309 = sshll.u32 %s305, 4
          %s310 = int_to_ptr.hbm [resolvable:$true] %s309
          %312 = dma.vmem_to_hbm [thread:$0]  %s308, 128, %s310, %s289
        $region52: #{tpu_custom_call.1} parent=31 // pred_fallthru
          _
        // Predicated region
        $region53: #{tpu_custom_call.1} parent=31 // pred_check
          %p313 = pneg %p154
        $region54: #{tpu_custom_call.1} parent=31 // pred_check_branch
          %315 = sbr.rel (%p313) target = $region56
        $region55: #{tpu_custom_call.1} parent=31 // pred_region
          %317 = vsyncadd %s294, 0
          %s318 = smul.addr %s30, 8
          %s319 = scalar_lea.hbm %s4, %s318
          %s321 = sshll.u32 %s297, 4
          %s322 = int_to_ptr.vmem [resolvable:$true] %s321
          %s323 = sshll.u32 %s319, 4
          %s324 = int_to_ptr.hbm [resolvable:$true] %s323
          %326 = dma.vmem_to_hbm [thread:$0]  %s322, 128, %s324, %s294
        $region56: #{tpu_custom_call.1} parent=31 // pred_fallthru
          _
      $region32: #{tpu_custom_call.1} parent=5 // pred_fallthru
        _
      %p327 = scmp.le.s32.totalorder 2, %s21
      // Predicated region
      $region57: #{tpu_custom_call.1} parent=5 // pred_check
        %p328 = pneg %p327
      $region58: #{tpu_custom_call.1} parent=5 // pred_check_branch
        %330 = sbr.rel (%p328) target = $region60
      $region59: #{tpu_custom_call.1} parent=5 // pred_region
        %s331 = ssub.s32 %s21, 2
        // Predicated region
        $region61: #{tpu_custom_call.1} parent=59 // pred_check
          %p332 = pneg %p134
        $region62: #{tpu_custom_call.1} parent=59 // pred_check_branch
          %334 = sbr.rel (%p332) target = $region64
        $region63: #{tpu_custom_call.1} parent=59 // pred_region
          %s335 = sand.u32 %s119, 1
          %s336 = scalar_lea.sflag [#allocation4], %s335
          %s337 = sand.u32 %s119, 1
          %s338 = smul.addr %s337, 8
          %s339 = scalar_lea.vmem [#allocation8], %s338
          %341 = dma.done %s336, 128
        $region64: #{tpu_custom_call.1} parent=59 // pred_fallthru
          _
        // Predicated region
        $region65: #{tpu_custom_call.1} parent=59 // pred_check
          %p342 = pneg %p160
        $region66: #{tpu_custom_call.1} parent=59 // pred_check_branch
          %344 = sbr.rel (%p342) target = $region68
        $region67: #{tpu_custom_call.1} parent=59 // pred_region
          %s345 = sand.u32 %s145, 1
          %s346 = scalar_lea.sflag [#allocation10], %s345
          %s347 = sand.u32 %s145, 1
          %s348 = smul.addr %s347, 8
          %s349 = scalar_lea.vmem [#allocation9], %s348
          %351 = dma.done %s346, 128
        $region68: #{tpu_custom_call.1} parent=59 // pred_fallthru
          _
      $region60: #{tpu_custom_call.1} parent=5 // pred_fallthru
        _
    $region6: #{tpu_custom_call.1} parent=1 // loop_footer
      %s25 = sadd.s32 1, %s21
    $region7: #{tpu_custom_call.1} parent=1 // loop_footer_branch
      %20 = sbr.rel target = $region3
    $region8: #{tpu_custom_call.1} parent=1 // loop_exit
      _
    %352 = vsyncpa [#allocation3], 1
    %s353 = scalar_lea.sflag [#allocation3], 1
    %354 = vsyncpa %s353, 1
    %355 = vsyncpa [#allocation6], 1
    %356 = vsyncpa [#allocation4], 1
    %s357 = scalar_lea.sflag [#allocation4], 1
    %358 = vsyncpa %s357, 1
    %359 = vsyncpa [#allocation10], 1
    %s360 = scalar_lea.sflag [#allocation10], 1
    %361 = vsyncpa %s360, 1

</llo_original>
